<compile_context>
chip_gen: v5e
topology: v5e:2x2
jax: 0.10.0
libtpu: 0.0.40
codegen_flags: <defaults>
</compile_context>

<pallas_src>
import jax
import jax.numpy as jnp
from jax.experimental import pallas as pl
from jax.experimental.pallas import tpu as pltpu


_VMEM_LIMIT_BYTES = 64 * 1024 * 1024   # scoped-VMEM ceiling (headroom over budget)
_TILE_BUDGET_BYTES = 32 * 1024 * 1024  # double-buffered tile budget (fits v7x 64 MiB)


def _round_up(x, m):
    return ((x + m - 1) // m) * m


# ---------------------------------------------------------------------------
# Kernels
# ---------------------------------------------------------------------------
def _linear_kernel_fullk(x_ref, w_ref, b_ref, o_ref):
    """Full K resident in VMEM: one MXU pass per (row, vocab) tile, no accumulator."""
    acc = jnp.dot(x_ref[...], w_ref[...], preferred_element_type=jnp.float32)
    o_ref[...] = (acc + b_ref[...].astype(jnp.float32)).astype(o_ref.dtype)


def _linear_kernel_ktiled(x_ref, w_ref, b_ref, o_ref, acc_ref):
    """Fallback: K tiled on the last grid axis with an f32 accumulator."""
    k = pl.program_id(2)

    @pl.when(k == 0)
    def _():
        # Fold the bias into the accumulator init (no epilogue add needed).
        acc_ref[...] = jnp.broadcast_to(
            b_ref[...].astype(jnp.float32), acc_ref.shape
        )

    acc_ref[...] += jnp.dot(
        x_ref[...], w_ref[...], preferred_element_type=jnp.float32
    )

    @pl.when(k == pl.num_programs(2) - 1)
    def _():
        o_ref[...] = acc_ref[...].astype(o_ref.dtype)


# ---------------------------------------------------------------------------
# Tile selection
# ---------------------------------------------------------------------------
def _choose_tiles(M, N, K, in_bytes, out_bytes, budget=_TILE_BUDGET_BYTES):
    """Return (tm, tn, tk, full_k).  full_k=True means the K grid axis is dropped."""
    Mr = _round_up(M, 16)               # sublane-friendly row tile (also ok for bf16 packing)
    tm = Mr if Mr <= 512 else 256
    Nr = _round_up(N, 128)
    K_full = _round_up(K, 128)

    # Candidate vocab-tile widths: multiples of 256 preferred (fills v6e/v7x MXU),
    # skip widths that would pad N by more than ~12.5%.
    cands = [t for t in (2048, 1024, 512, 256, 128) if t <= Nr]
    cands = [t for t in cands if _round_up(Nr, t) - Nr <= max(Nr // 8, 0)] or [128]

    # Preferred path: whole K dimension resident (no accumulator / output revisit).
    for tn in cands:
        vmem = (2 * (tm * K_full + K_full * tn) * in_bytes   # double-buffered inputs
                + 2 * tm * tn * out_bytes                    # double-buffered output
                + 2 * tn * 4)                                # bias tile
        if vmem <= budget:
            return tm, tn, K_full, True

    # Fallback: tile the reduction over K.
    tk = min(512, K_full)
    for tn in cands:
        vmem = (2 * (tm * tk + tk * tn) * in_bytes
                + 2 * tm * tn * out_bytes
                + tm * tn * 4                                # accumulator scratch
                + 2 * tn * 4)
        if vmem <= budget:
            return tm, tn, tk, False
    return tm, 128, 128, False           # conservative last resort


# ---------------------------------------------------------------------------
# Forward wrapper
# ---------------------------------------------------------------------------
@jax.jit
def last_line_forward(x, w_t, b):
    """Equivalent of LastLine.forward: y = x @ w_t + b.

    x:   (..., num_hiddens)
    w_t: (num_hiddens, vocab_size)   (transpose of the torch Linear weight)
    b:   (vocab_size,)
    """
    *lead, K = x.shape
    N = w_t.shape[1]
    M = 1
    for d in lead:
        M *= d

    out_dtype = x.dtype
    # Compute in the (promoted) input dtype: no extra cast pass over the big
    # weight; MXU still accumulates in f32.
    compute_dtype = jnp.promote_types(x.dtype, w_t.dtype)
    in_bytes = jnp.dtype(compute_dtype).itemsize
    out_bytes = jnp.dtype(out_dtype).itemsize

    tm, tn, tk, full_k = _choose_tiles(M, N, K, in_bytes, out_bytes)

    M_pad = _round_up(M, tm)
    N_pad = _round_up(N, tn)
    K_pad = tk if full_k else _round_up(K, tk)

    x2 = x.reshape(M, K).astype(compute_dtype)
    w2 = w_t.astype(compute_dtype)
    b2 = b.reshape(1, N).astype(jnp.float32)

    if M_pad != M or K_pad != K:
        x2 = jnp.pad(x2, ((0, M_pad - M), (0, K_pad - K)))
    if K_pad != K or N_pad != N:
        w2 = jnp.pad(w2, ((0, K_pad - K), (0, N_pad - N)))
    if N_pad != N:
        b2 = jnp.pad(b2, ((0, 0), (0, N_pad - N)))

    m_blocks = M_pad // tm
    n_blocks = N_pad // tn

    # Grid-order choice from an HBM traffic estimate:
    #   rows-outer (vocab fast): weight re-read m_blocks times, X read once.
    #   vocab-outer (rows fast): weight read once, X re-read n_blocks times.
    weight_elems = K_pad * N_pad
    x_elems = M_pad * K_pad
    rows_outer = (m_blocks * weight_elems + x_elems) <= (weight_elems + n_blocks * x_elems)

    if rows_outer:
        grid2 = (m_blocks, n_blocks)
        x_map2 = lambda i, j: (i, 0)
        w_map2 = lambda i, j: (0, j)
        b_map2 = lambda i, j: (0, j)
        o_map2 = lambda i, j: (i, j)
        grid3 = (m_blocks, n_blocks, K_pad // tk)
        x_map3 = lambda i, j, k: (i, k)
        w_map3 = lambda i, j, k: (k, j)
        b_map3 = lambda i, j, k: (0, j)
        o_map3 = lambda i, j, k: (i, j)
    else:
        grid2 = (n_blocks, m_blocks)
        x_map2 = lambda j, i: (i, 0)
        w_map2 = lambda j, i: (0, j)
        b_map2 = lambda j, i: (0, j)
        o_map2 = lambda j, i: (i, j)
        grid3 = (n_blocks, m_blocks, K_pad // tk)
        x_map3 = lambda j, i, k: (i, k)
        w_map3 = lambda j, i, k: (k, j)
        b_map3 = lambda j, i, k: (0, j)
        o_map3 = lambda j, i, k: (i, j)

    if full_k:
        out = pl.pallas_call(
            _linear_kernel_fullk,
            out_shape=jax.ShapeDtypeStruct((M_pad, N_pad), out_dtype),
            grid_spec=pltpu.PrefetchScalarGridSpec(
                num_scalar_prefetch=0,
                grid=grid2,
                in_specs=[
                    pl.BlockSpec((tm, K_pad), x_map2),   # X row-block
                    pl.BlockSpec((K_pad, tn), w_map2),   # W_t vocab slab
                    pl.BlockSpec((1, tn), b_map2),       # bias slab
                ],
                out_specs=pl.BlockSpec((tm, tn), o_map2),
            ),
            compiler_params=pltpu.CompilerParams(
                dimension_semantics=("parallel", "parallel"),
                vmem_limit_bytes=_VMEM_LIMIT_BYTES,
            ),
        )(x2, w2, b2)
    else:
        out = pl.pallas_call(
            _linear_kernel_ktiled,
            out_shape=jax.ShapeDtypeStruct((M_pad, N_pad), out_dtype),
            grid_spec=pltpu.PrefetchScalarGridSpec(
                num_scalar_prefetch=0,
                grid=grid3,
                in_specs=[
                    pl.BlockSpec((tm, tk), x_map3),
                    pl.BlockSpec((tk, tn), w_map3),
                    pl.BlockSpec((1, tn), b_map3),
                ],
                out_specs=pl.BlockSpec((tm, tn), o_map3),
                scratch_shapes=[pltpu.VMEM((tm, tn), jnp.float32)],
            ),
            compiler_params=pltpu.CompilerParams(
                dimension_semantics=("parallel", "parallel", "arbitrary"),
                vmem_limit_bytes=_VMEM_LIMIT_BYTES,
            ),
        )(x2, w2, b2)

    out = out[:M, :N]
    return out.reshape(*lead, N)


def init_last_line_params(key, num_hiddens, vocab_size, dtype=jnp.float32):
    """Deterministic init matching nn.Linear's default uniform(-1/sqrt(in), 1/sqrt(in))."""
    kw, kb = jax.random.split(key)
    bound = 1.0 / (num_hiddens ** 0.5)
    # torch stores weight as (vocab_size, num_hiddens); we keep the transpose.
    w_t = jax.random.uniform(
        kw, (num_hiddens, vocab_size), dtype=dtype, minval=-bound, maxval=bound
    )
    b = jax.random.uniform(
        kb, (vocab_size,), dtype=dtype, minval=-bound, maxval=bound
    )
    return w_t, b


if __name__ == "__main__":
    batch, seq, num_hiddens, vocab_size = 2, 8, 128, 256

    key = jax.random.PRNGKey(0)
    kx, kp = jax.random.split(key)
    x = jax.random.normal(kx, (batch, seq, num_hiddens), dtype=jnp.float32)
    w_t, b = init_last_line_params(kp, num_hiddens, vocab_size)

    y = last_line_forward(x, w_t, b)
    y = jax.block_until_ready(y)

    # Reference check in plain JAX (f32). MXU f32 matmul uses bf16-pass
    # decomposition, so compare with a modest tolerance.
    y_ref = x @ w_t + b
    assert y.shape == (batch, seq, vocab_size)
    assert jnp.allclose(y, y_ref, atol=1e-2, rtol=1e-2), (
        float(jnp.max(jnp.abs(y - y_ref)))
    )

    print("KERNEL_OK")
</pallas_src>

<mosaic_0001>
module attributes {stable_mosaic.version = 11 : i64} {
  func.func @_linear_kernel_fullk(%arg0: i32, %arg1: i32, %arg2: memref<16x128xf32, #tpu.memory_space<vmem>>, %arg3: memref<128x256xf32, #tpu.memory_space<vmem>>, %arg4: memref<1x256xf32, #tpu.memory_space<vmem>>, %arg5: memref<16x256xf32, #tpu.memory_space<vmem>>) attributes {dimension_semantics = [#tpu.dimension_semantics<parallel>, #tpu.dimension_semantics<parallel>], iteration_bounds = array<i64: 1, 1>, scalar_prefetch = 0 : i64, scratch_operands = 0 : i64, tpu.core_type = #tpu.core_type<tc>, window_params = [{transform_indices = @transform_0, window_bounds = array<i64: 16, 128>}, {transform_indices = @transform_1, window_bounds = array<i64: 128, 256>}, {transform_indices = @transform_2, window_bounds = array<i64: 1, 256>}, {transform_indices = @transform_3, window_bounds = array<i64: 16, 256>}]} {
    %c0 = arith.constant 0 : index
    %c0_0 = arith.constant 0 : index
    %0 = vector.load %arg2[%c0, %c0_0] : memref<16x128xf32, #tpu.memory_space<vmem>>, vector<16x128xf32>
    %c0_1 = arith.constant 0 : index
    %c0_2 = arith.constant 0 : index
    %1 = vector.load %arg3[%c0_1, %c0_2] : memref<128x256xf32, #tpu.memory_space<vmem>>, vector<128x256xf32>
    %cst = arith.constant dense<0.000000e+00> : vector<16x256xf32>
    %2 = tpu.matmul %0, %1, %cst {dimension_numbers = #tpu.dot_dimension_numbers<[1], [0], [0], [1], [0, 0, 1, 1], [], []>} : vector<16x128xf32>, vector<128x256xf32>, vector<16x256xf32> -> vector<16x256xf32>
    %c0_3 = arith.constant 0 : index
    %c0_4 = arith.constant 0 : index
    %3 = vector.load %arg4[%c0_3, %c0_4] : memref<1x256xf32, #tpu.memory_space<vmem>>, vector<1x256xf32>
    %4 = vector.broadcast %3 : vector<1x256xf32> to vector<16x256xf32>
    %5 = arith.addf %2, %4 : vector<16x256xf32>
    %c0_5 = arith.constant 0 : index
    %c0_6 = arith.constant 0 : index
    %6 = vector.load %arg5[%c0_5, %c0_6] : memref<16x256xf32, #tpu.memory_space<vmem>>, vector<16x256xf32>
    tpu.vector_store %arg5[%c0_5, %c0_6], %5 {strides = array<i32>} : memref<16x256xf32, #tpu.memory_space<vmem>>, vector<16x256xf32>,
    return
  }
  func.func @transform_0(%arg0: i32, %arg1: i32) -> (i32, i32) {
    %c0_i32 = arith.constant 0 : i32
    %c0_i32_0 = arith.constant 0 : i32
    return %arg0, %c0_i32 : i32, i32
  }
  func.func @transform_1(%arg0: i32, %arg1: i32) -> (i32, i32) {
    %c0_i32 = arith.constant 0 : i32
    %c0_i32_0 = arith.constant 0 : i32
    return %c0_i32, %arg1 : i32, i32
  }
  func.func @transform_2(%arg0: i32, %arg1: i32) -> (i32, i32) {
    %c0_i32 = arith.constant 0 : i32
    %c0_i32_0 = arith.constant 0 : i32
    return %c0_i32, %arg1 : i32, i32
  }
  func.func @transform_3(%arg0: i32, %arg1: i32) -> (i32, i32) {
    %c0_i32 = arith.constant 0 : i32
    return %arg0, %arg1 : i32, i32
  }
}

</mosaic_0001>

<llo_original>
// kernel: last_line_forward.1
$region0: #{last_line_forward.1}
  #allocation0 [shape = 'u32[]', space=smem, size = 0x4, offset = 0x4, fixed_abs, tag = 'smem constant byte address 0x4 - core index']
  #allocation1 [shape = 'u32[72,128]{1,0:T(1,128)}', space=vmem, size = 0x9000, scoped, tag = 'internal scratch']
  %s0 = inlined_call_operand.hbm [shape: f32[16,128], index: 0, kind: input, shape index: {}]
  %s1 = inlined_call_operand.hbm [shape: f32[128,256], index: 1, kind: input, shape index: {}]
  %s2 = inlined_call_operand.vmem [shape: f32[1,256], index: 2, kind: input, shape index: {}]
  %s3 = inlined_call_operand.hbm [shape: f32[16,256], index: 3, kind: output, shape index: {}]
  %s4 = sld [smem:[#allocation0]]
  $region30: #{last_line_forward.1} parent=0
    _
  %s6 = ssub.s32 1, %s4
  %s7 = scalar_select 0, %s6, %s4
  $region1: #{last_line_forward.1} parent=0
    #allocation2 [shape = 'u8[8192]{0}', space=vmem, size = 0x2000, scoped, tag = 'input window, operand 0, single buffered']
    #allocation3 [shape = 's32[1]{0}', space=sflag, size = 0x4, scoped, tag = 'scoped memory for last_line_forward.1']
    #allocation4 [shape = 's32[1]{0}', space=sflag, size = 0x4, scoped, tag = 'scoped memory for last_line_forward.1']
    #allocation5 [shape = 'u8[131072]{0}', space=vmem, size = 0x20000, scoped, tag = 'input window, operand 1, single buffered']
    #allocation6 [shape = 's32[1]{0}', space=sflag, size = 0x4, scoped, tag = 'scoped memory for last_line_forward.1']
    #allocation7 [shape = 'u8[16384]{0}', space=vmem, size = 0x4000, scoped, tag = 'output window, operand 0, single buffered']
    %8 = vsyncpa [#allocation3], 0
    %9 = vsyncpa [#allocation6], 0
    %10 = vsyncpa [#allocation4], 0
    // Predicated region
    $region2: #{last_line_forward.1} parent=1 // pred_check
      _
    $region3: #{last_line_forward.1} parent=1 // pred_check_branch
      %12 = sbr.rel (0) target = $region5
    $region4: #{last_line_forward.1} parent=1 // pred_region
      %14 = vsyncadd [#allocation3], 0
      %s15 = sshll.u32 %s0, 4
      %s16 = int_to_ptr.hbm [resolvable:$true] %s15
      %s17 = sshll.u32 [#allocation2], 4
      %s18 = int_to_ptr.vmem [resolvable:$true] %s17
      %23 = dma.hbm_to_vmem [thread:$0]  %s16, 256, %s18, [#allocation3], 128, 128, 8
    $region5: #{last_line_forward.1} parent=1 // pred_fallthru
      _
    // Predicated region
    $region6: #{last_line_forward.1} parent=1 // pred_check
      _
    $region7: #{last_line_forward.1} parent=1 // pred_check_branch
      %25 = sbr.rel (0) target = $region9
    $region8: #{last_line_forward.1} parent=1 // pred_region
      %27 = vsyncadd [#allocation6], 0
      %s28 = sshll.u32 %s1, 4
      %s29 = int_to_ptr.hbm [resolvable:$true] %s28
      %s30 = sshll.u32 [#allocation5], 4
      %s31 = int_to_ptr.vmem [resolvable:$true] %s30
      %36 = dma.hbm_to_vmem [thread:$0]  %s29, 4096, %s31, [#allocation6], 256, 256, 16
    $region9: #{last_line_forward.1} parent=1 // pred_fallthru
      _
    // Predicated region
    $region10: #{last_line_forward.1} parent=1 // pred_check
      _
    $region11: #{last_line_forward.1} parent=1 // pred_check_branch
      %38 = sbr.rel (0) target = $region13
    $region12: #{last_line_forward.1} parent=1 // pred_region
      _
    $region13: #{last_line_forward.1} parent=1 // pred_fallthru
      _
    // Predicated region
    $region14: #{last_line_forward.1} parent=1 // pred_check
      _
    $region15: #{last_line_forward.1} parent=1 // pred_check_branch
      %40 = sbr.rel (0) target = $region17
    $region16: #{last_line_forward.1} parent=1 // pred_region
      %42 = dma.done [#allocation3], 256
    $region17: #{last_line_forward.1} parent=1 // pred_fallthru
      _
    // Predicated region
    $region18: #{last_line_forward.1} parent=1 // pred_check
      _
    $region19: #{last_line_forward.1} parent=1 // pred_check_branch
      %44 = sbr.rel (0) target = $region21
    $region20: #{last_line_forward.1} parent=1 // pred_region
      %46 = dma.done [#allocation6], 4096
    $region21: #{last_line_forward.1} parent=1 // pred_fallthru
      _
    %v47 = vld [vmem:[#allocation2] sm:$0xff]
    %v48 = vld [vmem:[#allocation2 + $0x8] sm:$0xff]
    %v49 = vld [vmem:[#allocation5] sm:$0xff]
    %v50 = vld [vmem:[#allocation5 + $0x8] sm:$0xff]
    %v51 = vld [vmem:[#allocation5 + $0x10] sm:$0xff]
    %v52 = vld [vmem:[#allocation5 + $0x18] sm:$0xff]
    %v53 = vld [vmem:[#allocation5 + $0x20] sm:$0xff]
    %v54 = vld [vmem:[#allocation5 + $0x28] sm:$0xff]
    %v55 = vld [vmem:[#allocation5 + $0x30] sm:$0xff]
    %v56 = vld [vmem:[#allocation5 + $0x38] sm:$0xff]
    %v57 = vld [vmem:[#allocation5 + $0x40] sm:$0xff]
    %v58 = vld [vmem:[#allocation5 + $0x48] sm:$0xff]
    %v59 = vld [vmem:[#allocation5 + $0x50] sm:$0xff]
    %v60 = vld [vmem:[#allocation5 + $0x58] sm:$0xff]
    %v61 = vld [vmem:[#allocation5 + $0x60] sm:$0xff]
    %v62 = vld [vmem:[#allocation5 + $0x68] sm:$0xff]
    %v63 = vld [vmem:[#allocation5 + $0x70] sm:$0xff]
    %v64 = vld [vmem:[#allocation5 + $0x78] sm:$0xff]
    %v65 = vld [vmem:[#allocation5 + $0x80] sm:$0xff]
    %v66 = vld [vmem:[#allocation5 + $0x88] sm:$0xff]
    %v67 = vld [vmem:[#allocation5 + $0x90] sm:$0xff]
    %v68 = vld [vmem:[#allocation5 + $0x98] sm:$0xff]
    %v69 = vld [vmem:[#allocation5 + $0xa0] sm:$0xff]
    %v70 = vld [vmem:[#allocation5 + $0xa8] sm:$0xff]
    %v71 = vld [vmem:[#allocation5 + $0xb0] sm:$0xff]
    %v72 = vld [vmem:[#allocation5 + $0xb8] sm:$0xff]
    %v73 = vld [vmem:[#allocation5 + $0xc0] sm:$0xff]
    %v74 = vld [vmem:[#allocation5 + $0xc8] sm:$0xff]
    %v75 = vld [vmem:[#allocation5 + $0xd0] sm:$0xff]
    %v76 = vld [vmem:[#allocation5 + $0xd8] sm:$0xff]
    %v77 = vld [vmem:[#allocation5 + $0xe0] sm:$0xff]
    %v78 = vld [vmem:[#allocation5 + $0xe8] sm:$0xff]
    %v79 = vld [vmem:[#allocation5 + $0xf0] sm:$0xff]
    %v80 = vld [vmem:[#allocation5 + $0xf8] sm:$0xff]
    %v81 = vld [vmem:[%s2] sm:$0x3]
    %v83 = vperm.slane %v81, 0
    %v84 = vperm.slane %v81, 1
    %87 = vmatpush.msra.mxu0 %v79
    %88 = vmatpush.msra.mxu0 %v77
    %89 = vmatpush.msra.mxu0 %v75
    %90 = vmatpush.msra.mxu0 %v73
    %91 = vmatpush.msra.mxu0 %v71
    %92 = vmatpush.msra.mxu0 %v69
    %93 = vmatpush.msra.mxu0 %v67
    %94 = vmatpush.msra.mxu0 %v65
    %95 = vmatpush.msra.mxu0 %v63
    %96 = vmatpush.msra.mxu0 %v61
    %97 = vmatpush.msra.mxu0 %v59
    %98 = vmatpush.msra.mxu0 %v57
    %99 = vmatpush.msra.mxu0 %v55
    %100 = vmatpush.msra.mxu0 %v53
    %101 = vmatpush.msra.mxu0 %v51
    %102 = vmatpush.msra.mxu0 %v49
    %103 = vmatmul.f32.gmra.mxu0 %v47
    %v104 = vpop.f32.mrf.mxu0
    %v105 = vadd.f32 %v83, %v104
    %106 = vmatmul.f32.gmra.mxu0 %v48
    %v107 = vpop.f32.mrf.mxu0
    %v108 = vadd.f32 %v83, %v107
    %109 = vdwg.mxu0
    %110 = vmatpush.msra.mxu0 %v80
    %111 = vmatpush.msra.mxu0 %v78
    %112 = vmatpush.msra.mxu0 %v76
    %113 = vmatpush.msra.mxu0 %v74
    %114 = vmatpush.msra.mxu0 %v72
    %115 = vmatpush.msra.mxu0 %v70
    %116 = vmatpush.msra.mxu0 %v68
    %117 = vmatpush.msra.mxu0 %v66
    %118 = vmatpush.msra.mxu0 %v64
    %119 = vmatpush.msra.mxu0 %v62
    %120 = vmatpush.msra.mxu0 %v60
    %121 = vmatpush.msra.mxu0 %v58
    %122 = vmatpush.msra.mxu0 %v56
    %123 = vmatpush.msra.mxu0 %v54
    %124 = vmatpush.msra.mxu0 %v52
    %125 = vmatpush.msra.mxu0 %v50
    %126 = vmatmul.f32.gmra.mxu0 %v47
    %v127 = vpop.f32.mrf.mxu0
    %v128 = vadd.f32 %v84, %v127
    %129 = vmatmul.f32.gmra.mxu0 %v48
    %v130 = vpop.f32.mrf.mxu0
    %v131 = vadd.f32 %v84, %v130
    %132 = vdwg.mxu0
    %133 = vst [vmem:[#allocation7] sm:$0xff] %v105
    %134 = vst [vmem:[#allocation7 + $0x8] sm:$0xff] %v128
    %135 = vst [vmem:[#allocation7 + $0x10] sm:$0xff] %v108
    %136 = vst [vmem:[#allocation7 + $0x18] sm:$0xff] %v131
    // Predicated region
    $region22: #{last_line_forward.1} parent=1 // pred_check
      _
    $region23: #{last_line_forward.1} parent=1 // pred_check_branch
      %138 = sbr.rel (0) target = $region25
    $region24: #{last_line_forward.1} parent=1 // pred_region
      %140 = vsyncadd [#allocation4], 0
      %s141 = sshll.u32 [#allocation7], 4
      %s142 = int_to_ptr.vmem [resolvable:$true] %s141
      %s143 = sshll.u32 %s3, 4
      %s144 = int_to_ptr.hbm [resolvable:$true] %s143
      %149 = dma.vmem_to_hbm [thread:$0]  %s142, 512, %s144, [#allocation4], 256, 256, 16
    $region25: #{last_line_forward.1} parent=1 // pred_fallthru
      _
    // Predicated region
    $region26: #{last_line_forward.1} parent=1 // pred_check
      _
    $region27: #{last_line_forward.1} parent=1 // pred_check_branch
      %151 = sbr.rel (0) target = $region29
    $region28: #{last_line_forward.1} parent=1 // pred_region
      %153 = dma.done [#allocation4], 512
    $region29: #{last_line_forward.1} parent=1 // pred_fallthru
      _
    %154 = vsyncpa [#allocation3], 1
    %155 = vsyncpa [#allocation6], 1
    %156 = vsyncpa [#allocation4], 1

</llo_original>
